<compile_context>
chip_gen: v5e
topology: v5e:2x2
jax: 0.10.0
libtpu: 0.0.40
codegen_flags: <defaults>
</compile_context>

<pallas_src>
import functools

import jax
import jax.numpy as jnp
from jax.experimental import pallas as pl
from jax.experimental.pallas import tpu as pltpu


# ---------------------------------------------------------------------------
# Fused kernel: maxpool2x2 -> conv3x3(pad=1) -> ReLU   (one batch element/step)
# ---------------------------------------------------------------------------
def _bridge_down_kernel(x_ref, w_ref, b_ref, o_ref, *, cin, hp, wp):
    # x_ref: (1, hp+2, 2, wp+2, 2*cin) bf16
    #   - input was zero-padded by 2 pixels on each spatial side, so pooling it
    #     directly yields the conv's 1-pixel zero ring for free,
    #   - dim 2 is the row parity of each 2x2 window,
    #   - the column parity of each window is folded into the lane dim (2*cin).
    # w_ref: (9*cin, cout_pad) bf16, b_ref: (1, cout_pad) f32
    # o_ref: (1, hp*wp, cout_pad) f32

    x = x_ref[0].astype(jnp.float32)                    # elementwise math in f32 (v5e-safe)

    # ---- 2x2 max pool (gives the zero-padded pooled map, shape (hp+2, wp+2, cin))
    rmax = jnp.maximum(x[:, 0], x[:, 1])                # max over row parity
    pooled = jnp.maximum(rmax[..., :cin], rmax[..., cin:])  # max over column parity

    # ---- im2col built entirely in VMEM: nine shifted taps -> (hp*wp, 9*cin)
    taps = [pooled[i:i + hp, j:j + wp, :] for i in range(3) for j in range(3)]
    patches = jnp.concatenate(taps, axis=-1)            # (hp, wp, 9*cin)
    patches = patches.reshape(hp * wp, 9 * cin)         # collapse spatial dims (f32 layout)
    patches = patches.astype(jnp.bfloat16)              # bf16 MXU operand

    # ---- single MXU contraction, f32 accumulation, bias + ReLU in f32
    acc = jnp.dot(patches, w_ref[...], preferred_element_type=jnp.float32)
    acc = acc + b_ref[...]
    o_ref[0] = jnp.maximum(acc, 0.0).astype(o_ref.dtype)


# ---------------------------------------------------------------------------
# Wrapper: NCHW in / NCHW out, PyTorch Conv2d (OIHW) weights
# ---------------------------------------------------------------------------
def bridge_down(x_nchw, w_oihw, bias):
    n, cin, h, w = x_nchw.shape
    cout = w_oihw.shape[0]
    assert h % 2 == 0 and w % 2 == 0, "MaxPool2d(2) path assumes even H, W"
    # TODO(synk): for odd H/W, replicate PyTorch's floor-pooling by cropping the
    # trailing row/col before padding.

    hp, wp = h // 2, w // 2
    cin_p = max(8, ((cin + 7) // 8) * 8)        # sublane-friendly contraction granule
    cpad = ((cout + 127) // 128) * 128          # lane-dense output stores

    # --- activations: NCHW -> NHWC, pad channels to cin_p, pad spatial by 2
    # (after 2x2 pooling the spatial pad becomes exactly the conv's zero ring),
    # regroup so the in-kernel pool needs no strided access, cast to bf16.
    x_nhwc = jnp.transpose(x_nchw, (0, 2, 3, 1))
    xp = jnp.pad(x_nhwc, ((0, 0), (2, 2), (2, 2), (0, cin_p - cin)))
    xr = xp.astype(jnp.bfloat16).reshape(n, hp + 2, 2, wp + 2, 2 * cin_p)

    # --- weights: OIHW -> HWIO, pad Cin/Cout, flatten taps to the contraction dim
    w_hwio = jnp.transpose(w_oihw, (2, 3, 1, 0))                      # (3,3,cin,cout)
    w_hwio = jnp.pad(w_hwio, ((0, 0), (0, 0), (0, cin_p - cin), (0, cpad - cout)))
    w2 = w_hwio.reshape(9 * cin_p, cpad).astype(jnp.bfloat16)         # (9*cin_p, cpad)
    b2 = jnp.pad(bias.astype(jnp.float32), (0, cpad - cout)).reshape(1, cpad)

    kernel = functools.partial(_bridge_down_kernel, cin=cin_p, hp=hp, wp=wp)

    # TODO(synk): for large spatial extents add an HW-tile grid axis (with a
    # 1-row halo) so per-step blocks fit v7x's 64 MiB VMEM and both TensorCores
    # stay busy even at batch=1; at these shapes one block per batch suffices.
    out = pl.pallas_call(
        kernel,
        grid=(n,),
        in_specs=[
            pl.BlockSpec((1, hp + 2, 2, wp + 2, 2 * cin_p),
                         lambda i: (i, 0, 0, 0, 0)),
            pl.BlockSpec((9 * cin_p, cpad), lambda i: (0, 0)),
            pl.BlockSpec((1, cpad), lambda i: (0, 0)),
        ],
        out_specs=pl.BlockSpec((1, hp * wp, cpad), lambda i: (i, 0, 0)),
        out_shape=jax.ShapeDtypeStruct((n, hp * wp, cpad), jnp.float32),
        compiler_params=pltpu.CompilerParams(
            dimension_semantics=("parallel",),
            vmem_limit_bytes=32 * 1024 * 1024,
        ),
    )(xr, w2, b2)

    out = out[:, :, :cout].reshape(n, hp, wp, cout)
    return jnp.transpose(out, (0, 3, 1, 2))             # NHWC -> NCHW


# ---------------------------------------------------------------------------
# Pure-JAX reference (PyTorch semantics) for a correctness sanity check
# ---------------------------------------------------------------------------
def _reference(x_nchw, w_oihw, bias):
    x = jnp.transpose(x_nchw, (0, 2, 3, 1))
    x = jax.lax.reduce_window(
        x, -jnp.inf, jax.lax.max, (1, 2, 2, 1), (1, 2, 2, 1), "VALID"
    )
    w_hwio = jnp.transpose(w_oihw, (2, 3, 1, 0))
    y = jax.lax.conv_general_dilated(
        x, w_hwio, (1, 1), ((1, 1), (1, 1)),
        dimension_numbers=("NHWC", "HWIO", "NHWC"),
        precision=jax.lax.Precision.HIGHEST,
    )
    y = jax.nn.relu(y + bias)
    return jnp.transpose(y, (0, 3, 1, 2))


if __name__ == "__main__":
    key = jax.random.PRNGKey(0)
    kx, kw, kb = jax.random.split(key, 3)

    in_channels, out_channels = 4, 8
    x = jax.random.normal(kx, (2, in_channels, 16, 16), jnp.float32)          # NCHW
    weight = 0.1 * jax.random.normal(kw, (out_channels, in_channels, 3, 3), jnp.float32)
    bias = 0.1 * jax.random.normal(kb, (out_channels,), jnp.float32)

    out = jax.block_until_ready(bridge_down(x, weight, bias))
    ref = jax.block_until_ready(_reference(x, weight, bias))

    assert out.shape == (2, out_channels, 8, 8), out.shape
    # bf16 MXU operands with f32 accumulation vs an f32/HIGHEST reference.
    max_err = float(jnp.max(jnp.abs(out - ref)))
    assert jnp.allclose(out, ref, rtol=2e-2, atol=2e-2), max_err
    print("KERNEL_OK")
</pallas_src>

<mosaic_0001>
module attributes {stable_mosaic.version = 11 : i64} {
  func.func @_bridge_down_kernel(%arg0: i32, %arg1: memref<1x10x2x10x16xbf16, #tpu.memory_space<vmem>>, %arg2: memref<72x128xbf16, #tpu.memory_space<vmem>>, %arg3: memref<1x128xf32, #tpu.memory_space<vmem>>, %arg4: memref<1x64x128xf32, #tpu.memory_space<vmem>>) attributes {dimension_semantics = [#tpu.dimension_semantics<parallel>], iteration_bounds = array<i64: 2>, scalar_prefetch = 0 : i64, scratch_operands = 0 : i64, tpu.core_type = #tpu.core_type<tc>, window_params = [{transform_indices = @transform_0, window_bounds = array<i64: 1, 10, 2, 10, 16>}, {pipeline_mode = #tpu.pipeline_mode<synchronous>, transform_indices = @transform_1, window_bounds = array<i64: 72, 128>}, {pipeline_mode = #tpu.pipeline_mode<synchronous>, transform_indices = @transform_2, window_bounds = array<i64: 1, 128>}, {transform_indices = @transform_3, window_bounds = array<i64: 1, 64, 128>}]} {
    %c0 = arith.constant 0 : index
    %c0_0 = arith.constant 0 : index
    %c0_1 = arith.constant 0 : index
    %c0_2 = arith.constant 0 : index
    %c0_3 = arith.constant 0 : index
    %0 = vector.load %arg1[%c0, %c0_0, %c0_1, %c0_2, %c0_3] : memref<1x10x2x10x16xbf16, #tpu.memory_space<vmem>>, vector<1x10x2x10x16xbf16>
    %1 = vector.shape_cast %0 : vector<1x10x2x10x16xbf16> to vector<10x2x10x16xbf16>
    %2 = arith.extf %1 : vector<10x2x10x16xbf16> to vector<10x2x10x16xf32>
    %3 = vector.extract_strided_slice %2 {offsets = [0, 0, 0, 0], sizes = [10, 1, 10, 16], strides = [1, 1, 1, 1]} : vector<10x2x10x16xf32> to vector<10x1x10x16xf32>
    %4 = vector.shape_cast %3 : vector<10x1x10x16xf32> to vector<10x10x16xf32>
    %5 = vector.extract_strided_slice %2 {offsets = [0, 1, 0, 0], sizes = [10, 1, 10, 16], strides = [1, 1, 1, 1]} : vector<10x2x10x16xf32> to vector<10x1x10x16xf32>
    %6 = vector.shape_cast %5 : vector<10x1x10x16xf32> to vector<10x10x16xf32>
    %7 = arith.maximumf %4, %6 : vector<10x10x16xf32>
    %8 = vector.extract_strided_slice %7 {offsets = [0, 0, 0], sizes = [10, 10, 8], strides = [1, 1, 1]} : vector<10x10x16xf32> to vector<10x10x8xf32>
    %9 = vector.extract_strided_slice %7 {offsets = [0, 0, 8], sizes = [10, 10, 8], strides = [1, 1, 1]} : vector<10x10x16xf32> to vector<10x10x8xf32>
    %10 = arith.maximumf %8, %9 : vector<10x10x8xf32>
    %11 = vector.extract_strided_slice %10 {offsets = [0, 0, 0], sizes = [8, 8, 8], strides = [1, 1, 1]} : vector<10x10x8xf32> to vector<8x8x8xf32>
    %12 = vector.extract_strided_slice %10 {offsets = [0, 1, 0], sizes = [8, 8, 8], strides = [1, 1, 1]} : vector<10x10x8xf32> to vector<8x8x8xf32>
    %13 = vector.extract_strided_slice %10 {offsets = [0, 2, 0], sizes = [8, 8, 8], strides = [1, 1, 1]} : vector<10x10x8xf32> to vector<8x8x8xf32>
    %14 = vector.extract_strided_slice %10 {offsets = [1, 0, 0], sizes = [8, 8, 8], strides = [1, 1, 1]} : vector<10x10x8xf32> to vector<8x8x8xf32>
    %15 = vector.extract_strided_slice %10 {offsets = [1, 1, 0], sizes = [8, 8, 8], strides = [1, 1, 1]} : vector<10x10x8xf32> to vector<8x8x8xf32>
    %16 = vector.extract_strided_slice %10 {offsets = [1, 2, 0], sizes = [8, 8, 8], strides = [1, 1, 1]} : vector<10x10x8xf32> to vector<8x8x8xf32>
    %17 = vector.extract_strided_slice %10 {offsets = [2, 0, 0], sizes = [8, 8, 8], strides = [1, 1, 1]} : vector<10x10x8xf32> to vector<8x8x8xf32>
    %18 = vector.extract_strided_slice %10 {offsets = [2, 1, 0], sizes = [8, 8, 8], strides = [1, 1, 1]} : vector<10x10x8xf32> to vector<8x8x8xf32>
    %19 = vector.extract_strided_slice %10 {offsets = [2, 2, 0], sizes = [8, 8, 8], strides = [1, 1, 1]} : vector<10x10x8xf32> to vector<8x8x8xf32>
    %20 = tpu.concatenate %11, %12, %13, %14, %15, %16, %17, %18, %19 in 2 : vector<8x8x8xf32>, vector<8x8x8xf32>, vector<8x8x8xf32>, vector<8x8x8xf32>, vector<8x8x8xf32>, vector<8x8x8xf32>, vector<8x8x8xf32>, vector<8x8x8xf32>, vector<8x8x8xf32> -> vector<8x8x72xf32>
    %21 = vector.shape_cast %20 : vector<8x8x72xf32> to vector<64x72xf32>
    %22 = arith.truncf %21 : vector<64x72xf32> to vector<64x72xbf16>
    %c0_4 = arith.constant 0 : index
    %c0_5 = arith.constant 0 : index
    %23 = vector.load %arg2[%c0_4, %c0_5] : memref<72x128xbf16, #tpu.memory_space<vmem>>, vector<72x128xbf16>
    %cst = arith.constant dense<0.000000e+00> : vector<64x128xf32>
    %24 = tpu.matmul %22, %23, %cst {dimension_numbers = #tpu.dot_dimension_numbers<[1], [0], [0], [1], [0, 0, 1, 1], [], []>} : vector<64x72xbf16>, vector<72x128xbf16>, vector<64x128xf32> -> vector<64x128xf32>
    %c0_6 = arith.constant 0 : index
    %c0_7 = arith.constant 0 : index
    %25 = vector.load %arg3[%c0_6, %c0_7] : memref<1x128xf32, #tpu.memory_space<vmem>>, vector<1x128xf32>
    %26 = vector.broadcast %25 : vector<1x128xf32> to vector<64x128xf32>
    %27 = arith.addf %24, %26 : vector<64x128xf32>
    %cst_8 = arith.constant 0.000000e+00 : f32
    %28 = vector.broadcast %cst_8 : f32 to vector<64x128xf32>
    %29 = arith.maximumf %27, %28 : vector<64x128xf32>
    %c0_9 = arith.constant 0 : index
    %c0_10 = arith.constant 0 : index
    %c0_11 = arith.constant 0 : index
    %30 = vector.load %arg4[%c0_9, %c0_10, %c0_11] : memref<1x64x128xf32, #tpu.memory_space<vmem>>, vector<1x64x128xf32>
    %31 = vector.shape_cast %30 : vector<1x64x128xf32> to vector<64x128xf32>
    %32 = vector.shape_cast %29 : vector<64x128xf32> to vector<1x64x128xf32>
    tpu.vector_store %arg4[%c0_9, %c0_10, %c0_11], %32 {strides = array<i32>} : memref<1x64x128xf32, #tpu.memory_space<vmem>>, vector<1x64x128xf32>,
    return
  }
  func.func @transform_0(%arg0: i32) -> (i32, i32, i32, i32, i32) {
    %c0_i32 = arith.constant 0 : i32
    %c0_i32_0 = arith.constant 0 : i32
    %c0_i32_1 = arith.constant 0 : i32
    %c0_i32_2 = arith.constant 0 : i32
    %c0_i32_3 = arith.constant 0 : i32
    return %arg0, %c0_i32, %c0_i32_0, %c0_i32_1, %c0_i32_2 : i32, i32, i32, i32, i32
  }
  func.func @transform_1(%arg0: i32) -> (i32, i32) {
    %c0_i32 = arith.constant 0 : i32
    %c0_i32_0 = arith.constant 0 : i32
    %c0_i32_1 = arith.constant 0 : i32
    return %c0_i32, %c0_i32_0 : i32, i32
  }
  func.func @transform_2(%arg0: i32) -> (i32, i32) {
    %c0_i32 = arith.constant 0 : i32
    %c0_i32_0 = arith.constant 0 : i32
    %c0_i32_1 = arith.constant 0 : i32
    return %c0_i32, %c0_i32_0 : i32, i32
  }
  func.func @transform_3(%arg0: i32) -> (i32, i32, i32) {
    %c0_i32 = arith.constant 0 : i32
    %c0_i32_0 = arith.constant 0 : i32
    %c0_i32_1 = arith.constant 0 : i32
    return %arg0, %c0_i32, %c0_i32_0 : i32, i32, i32
  }
}

</mosaic_0001>

<llo_original>
// kernel: tpu_custom_call.1
$region0: #{tpu_custom_call.1}
  #allocation0 [shape = 'u32[]', space=smem, size = 0x4, offset = 0x4, fixed_abs, tag = 'smem constant byte address 0x4 - core index']
  #allocation1 [shape = 'u32[72,128]{1,0:T(1,128)}', space=vmem, size = 0x9000, scoped, tag = 'internal scratch']
  %s0 = inlined_call_operand.vmem [shape: bf16[2,10,2,10,16], index: 0, kind: input, shape index: {}]
  %s1 = inlined_call_operand.vmem [shape: bf16[72,128], index: 1, kind: input, shape index: {}]
  %s2 = inlined_call_operand.vmem [shape: f32[1,128], index: 2, kind: input, shape index: {}]
  %s3 = inlined_call_operand.hbm [shape: f32[2,64,128], index: 3, kind: output, shape index: {}]
  %s4 = sld [smem:[#allocation0]]
  $region45: #{tpu_custom_call.1} parent=0
    _
  %s6 = ssub.s32 1, %s4
  %s7 = scalar_select 0, %s6, %s4
  $region1: #{tpu_custom_call.1} parent=0
    #allocation2 [shape = 'u8[65536]{0}', space=vmem, size = 0x10000, scoped, tag = 'output window, operand 0']
    #allocation3 [shape = 's32[2]{0}', space=sflag, size = 0x8, scoped, tag = 'scoped memory for tpu_custom_call.1']
    %8 = vsyncpa [#allocation3], 0
    %s9 = scalar_lea.sflag [#allocation3], 1
    %10 = vsyncpa %s9, 0
    loop: start=0, step=1, limit=4
    $region2: #{tpu_custom_call.1} parent=1 // loop_pre_header
      _
    $region3: #{tpu_custom_call.1} parent=1 // loop_header
      %s12 = sphi 0, %s16
      %p13 = scmp.ge.s32.totalorder %s12, 4
      %s22 = sphi 0, %s24
      %s25 = sphi 0, %s22
      %s26 = sphi 0, %s25
      %s42 = sphi 0, %s26
      %s46 = sphi 0, %s46
      %s48 = sphi 0, %s46
      %s49 = sphi 0, %s48
      %s63 = sphi 0, %s49
      %s67 = sphi 0, %s67
      %s69 = sphi 0, %s67
      %s70 = sphi 0, %s69
      %s84 = sphi 0, %s70
      %s90 = sphi 0, %s92
      %s93 = sphi 0, %s90
      %s94 = sphi 0, %s93
      %s110 = sphi 0, %s94
    $region4: #{tpu_custom_call.1} parent=1 // loop_header_branch
      %15 = sbr.rel (%p13) target = $region8
    $region5: #{tpu_custom_call.1} parent=1 // loop_body
      %s17 = ssub.s32 %s12, 1
      %s18 = ssub.s32 %s12, 2
      %s19 = sadd.s32 %s12, 1
      %s20 = ssub.s32 %s12, %s19
      %p21 = scmp.eq.s32.totalorder %s20, 0
      %s23 = sadd.s32 %s22, 1
      %s24 = scalar_select %p21, %s22, %s23
      %p27 = pneg %p21
      %p28 = scmp.eq.s32.totalorder %s12, 1
      %p29 = por %p27, %p28
      %p30 = scmp.ne.s32.totalorder %s22, %s25
      %p31 = scmp.eq.s32.totalorder %s12, 0
      %p32 = por %p30, %p31
      %p33 = scmp.ne.s32.totalorder %s22, %s25
      %p34 = scmp.eq.s32.totalorder %s17, 1
      %p35 = por %p33, %p34
      %p36 = scmp.ne.s32.totalorder %s25, %s26
      %p37 = scmp.eq.s32.totalorder %s17, 0
      %p38 = por %p36, %p37
      %p39 = scmp.ne.s32.totalorder %s25, %s26
      %p40 = scmp.eq.s32.totalorder %s18, 1
      %p41 = por %p39, %p40
      %p43 = scmp.ne.s32.totalorder %s26, %s42
      %p44 = scmp.eq.s32.totalorder %s18, 0
      %p45 = por %p43, %p44
      %s47 = sadd.s32 %s46, 1
      %p50 = scmp.eq.s32.totalorder %s12, 1
      %p51 = scmp.ne.s32.totalorder %s46, %s48
      %p52 = scmp.eq.s32.totalorder %s12, 0
      %p53 = por %p51, %p52
      %p54 = scmp.ne.s32.totalorder %s46, %s48
      %p55 = scmp.eq.s32.totalorder %s17, 1
      %p56 = por %p54, %p55
      %p57 = scmp.ne.s32.totalorder %s48, %s49
      %p58 = scmp.eq.s32.totalorder %s17, 0
      %p59 = por %p57, %p58
      %p60 = scmp.ne.s32.totalorder %s48, %s49
      %p61 = scmp.eq.s32.totalorder %s18, 1
      %p62 = por %p60, %p61
      %p64 = scmp.ne.s32.totalorder %s49, %s63
      %p65 = scmp.eq.s32.totalorder %s18, 0
      %p66 = por %p64, %p65
      %s68 = sadd.s32 %s67, 1
      %p71 = scmp.eq.s32.totalorder %s12, 1
      %p72 = scmp.ne.s32.totalorder %s67, %s69
      %p73 = scmp.eq.s32.totalorder %s12, 0
      %p74 = por %p72, %p73
      %p75 = scmp.ne.s32.totalorder %s67, %s69
      %p76 = scmp.eq.s32.totalorder %s17, 1
      %p77 = por %p75, %p76
      %p78 = scmp.ne.s32.totalorder %s69, %s70
      %p79 = scmp.eq.s32.totalorder %s17, 0
      %p80 = por %p78, %p79
      %p81 = scmp.ne.s32.totalorder %s69, %s70
      %p82 = scmp.eq.s32.totalorder %s18, 1
      %p83 = por %p81, %p82
      %p85 = scmp.ne.s32.totalorder %s70, %s84
      %p86 = scmp.eq.s32.totalorder %s18, 0
      %p87 = por %p85, %p86
      %s88 = ssub.s32 %s12, %s19
      %p89 = scmp.eq.s32.totalorder %s88, 0
      %s91 = sadd.s32 %s90, 1
      %s92 = scalar_select %p89, %s90, %s91
      %p95 = pneg %p89
      %p96 = scmp.eq.s32.totalorder %s12, 1
      %p97 = por %p95, %p96
      %p98 = scmp.ne.s32.totalorder %s90, %s93
      %p99 = scmp.eq.s32.totalorder %s12, 0
      %p100 = por %p98, %p99
      %p101 = scmp.ne.s32.totalorder %s90, %s93
      %p102 = scmp.eq.s32.totalorder %s17, 1
      %p103 = por %p101, %p102
      %p104 = scmp.ne.s32.totalorder %s93, %s94
      %p105 = scmp.eq.s32.totalorder %s17, 0
      %p106 = por %p104, %p105
      %p107 = scmp.ne.s32.totalorder %s93, %s94
      %p108 = scmp.eq.s32.totalorder %s18, 1
      %p109 = por %p107, %p108
      %p111 = scmp.ne.s32.totalorder %s94, %s110
      %p112 = scmp.eq.s32.totalorder %s18, 0
      %p113 = por %p111, %p112
      %p114 = scmp.le.s32.totalorder 1, %s12
      %p115 = scmp.lt.s32.totalorder %s12, 3
      %p116 = pnand %p114, %p115
      %p117 = pneg %p116
      // Predicated region
      $region9: #{tpu_custom_call.1} parent=5 // pred_check
        _
      $region10: #{tpu_custom_call.1} parent=5 // pred_check_branch
        %119 = sbr.rel (%p116) target = $region12
      $region11: #{tpu_custom_call.1} parent=5 // pred_region
        %s120 = ssub.s32 %s12, 1
        // Predicated region
        $region13: #{tpu_custom_call.1} parent=11 // pred_check
          %p121 = pneg %p59
        $region14: #{tpu_custom_call.1} parent=11 // pred_check_branch
          %123 = sbr.rel (%p121) target = $region16
        $region15: #{tpu_custom_call.1} parent=11 // pred_region
          _
        $region16: #{tpu_custom_call.1} parent=11 // pred_fallthru
          _
        // Predicated region
        $region17: #{tpu_custom_call.1} parent=11 // pred_check
          %p124 = pneg %p80
        $region18: #{tpu_custom_call.1} parent=11 // pred_check_branch
          %126 = sbr.rel (%p124) target = $region20
        $region19: #{tpu_custom_call.1} parent=11 // pred_region
          _
        $region20: #{tpu_custom_call.1} parent=11 // pred_fallthru
          _
      $region12: #{tpu_custom_call.1} parent=5 // pred_fallthru
        _
      %p127 = scmp.lt.s32.totalorder %s12, 2
      // Predicated region
      $region21: #{tpu_custom_call.1} parent=5 // pred_check
        %p128 = pneg %p127
      $region22: #{tpu_custom_call.1} parent=5 // pred_check_branch
        %130 = sbr.rel (%p128) target = $region24
      $region23: #{tpu_custom_call.1} parent=5 // pred_region
        // Predicated region
        $region25: #{tpu_custom_call.1} parent=23 // pred_check
          %p131 = pneg %p32
        $region26: #{tpu_custom_call.1} parent=23 // pred_check_branch
          %133 = sbr.rel (%p131) target = $region28
        $region27: #{tpu_custom_call.1} parent=23 // pred_region
          %p134 = scmp.lt.s32.totalorder %s12, 1
          %s135 = scalar_select %p134, %s12, 1
          %s136 = smul.addr %s135, 40
          %s137 = smul.addr %s136, 4
          %s138 = scalar_lea.vmem %s0, %s137
        $region28: #{tpu_custom_call.1} parent=23 // pred_fallthru
          _
      $region24: #{tpu_custom_call.1} parent=5 // pred_fallthru
        _
      %p139 = scmp.le.s32.totalorder 1, %s12
      %p140 = scmp.lt.s32.totalorder %s12, 3
      %p141 = pnand %p139, %p140
      %p142 = pneg %p141
      // Predicated region
      $region29: #{tpu_custom_call.1} parent=5 // pred_check
        _
      $region30: #{tpu_custom_call.1} parent=5 // pred_check_branch
        %144 = sbr.rel (%p141) target = $region32
      $region31: #{tpu_custom_call.1} parent=5 // pred_region
        %s145 = ssub.s32 %s12, 1
        %p146 = scmp.lt.s32.totalorder %s17, 1
        %s147 = scalar_select %p146, %s17, 1
        %s148 = smul.addr %s147, 40
        %s149 = smul.addr %s148, 4
        %s150 = scalar_lea.vmem %s0, %s149
        %p151 = pneg %p38
        %p152 = pneg %p35
        %p153 = pneg %p59
        %p154 = pneg %p56
        %p155 = pneg %p80
        %p156 = pneg %p77
        %p157 = pneg %p106
        %p158 = pneg %p103
        %s159 = sand.u32 %s93, 1
        %s160 = scalar_lea.sflag [#allocation3], %s159
        %s161 = sand.u32 %s93, 1
        %s162 = smul.addr %s161, 64
        %s163 = scalar_lea.vmem [#allocation2], %s162
        %p164 = scmp.lt.s32.totalorder %s17, 1
        %s165 = scalar_select %p164, %s17, 1
        %s166 = smul.addr %s165, 40
        %s167 = smul.addr %s166, 4
        %s168 = scalar_lea.vmem %s0, %s167
        %v170 = vld [vmem:[%s168] sm:$0xf]
        %v171 = vld [vmem:[%s168 + $0x4] sm:$0x1]
        %v172 = vld [vmem:[%s168 + $0x8] sm:$0xf]
        %v173 = vld [vmem:[%s168 + $0xc] sm:$0x1]
        %v174 = vld [vmem:[%s168 + $0x10] sm:$0xf]
        %v175 = vld [vmem:[%s168 + $0x14] sm:$0x1]
        %v176 = vld [vmem:[%s168 + $0x18] sm:$0xf]
        %v177 = vld [vmem:[%s168 + $0x1c] sm:$0x1]
        %v178 = vld [vmem:[%s168 + $0x20] sm:$0xf]
        %v179 = vld [vmem:[%s168 + $0x24] sm:$0x1]
        %v180 = vld [vmem:[%s168 + $0x28] sm:$0xf]
        %v181 = vld [vmem:[%s168 + $0x2c] sm:$0x1]
        %v182 = vld [vmem:[%s168 + $0x30] sm:$0xf]
        %v183 = vld [vmem:[%s168 + $0x34] sm:$0x1]
        %v184 = vld [vmem:[%s168 + $0x38] sm:$0xf]
        %v185 = vld [vmem:[%s168 + $0x3c] sm:$0x1]
        %v186 = vld [vmem:[%s168 + $0x40] sm:$0xf]
        %v187 = vld [vmem:[%s168 + $0x44] sm:$0x1]
        %v188 = vld [vmem:[%s168 + $0x48] sm:$0xf]
        %v189 = vld [vmem:[%s168 + $0x4c] sm:$0x1]
        %v190 = vld [vmem:[%s168 + $0x50] sm:$0xf]
        %v191 = vld [vmem:[%s168 + $0x54] sm:$0x1]
        %v192 = vld [vmem:[%s168 + $0x58] sm:$0xf]
        %v193 = vld [vmem:[%s168 + $0x5c] sm:$0x1]
        %v194 = vld [vmem:[%s168 + $0x60] sm:$0xf]
        %v195 = vld [vmem:[%s168 + $0x64] sm:$0x1]
        %v196 = vld [vmem:[%s168 + $0x68] sm:$0xf]
        %v197 = vld [vmem:[%s168 + $0x6c] sm:$0x1]
        %v198 = vld [vmem:[%s168 + $0x70] sm:$0xf]
        %v199 = vld [vmem:[%s168 + $0x74] sm:$0x1]
        %v200 = vld [vmem:[%s168 + $0x78] sm:$0xf]
        %v201 = vld [vmem:[%s168 + $0x7c] sm:$0x1]
        %v202 = vld [vmem:[%s168 + $0x80] sm:$0xf]
        %v203 = vld [vmem:[%s168 + $0x84] sm:$0x1]
        %v204 = vld [vmem:[%s168 + $0x88] sm:$0xf]
        %v205 = vld [vmem:[%s168 + $0x8c] sm:$0x1]
        %v206 = vld [vmem:[%s168 + $0x90] sm:$0xf]
        %v207 = vld [vmem:[%s168 + $0x94] sm:$0x1]
        %v208 = vld [vmem:[%s168 + $0x98] sm:$0xf]
        %v209 = vld [vmem:[%s168 + $0x9c] sm:$0x1]
        %v210 = vunpack.c.l.bf16 %v170
        %v211 = vunpack.c.l.bf16 %v171
        %v212 = vunpack.c.l.bf16 %v172
        %v213 = vunpack.c.l.bf16 %v173
        %v214 = vunpack.c.l.bf16 %v174
        %v215 = vunpack.c.l.bf16 %v175
        %v216 = vunpack.c.l.bf16 %v176
        %v217 = vunpack.c.l.bf16 %v177
        %v218 = vunpack.c.l.bf16 %v178
        %v219 = vunpack.c.l.bf16 %v179
        %v220 = vunpack.c.l.bf16 %v180
        %v221 = vunpack.c.l.bf16 %v181
        %v222 = vunpack.c.l.bf16 %v182
        %v223 = vunpack.c.l.bf16 %v183
        %v224 = vunpack.c.l.bf16 %v184
        %v225 = vunpack.c.l.bf16 %v185
        %v226 = vunpack.c.l.bf16 %v186
        %v227 = vunpack.c.l.bf16 %v187
        %v228 = vunpack.c.l.bf16 %v188
        %v229 = vunpack.c.l.bf16 %v189
        %v230 = vunpack.c.l.bf16 %v190
        %v231 = vunpack.c.l.bf16 %v191
        %v232 = vunpack.c.l.bf16 %v192
        %v233 = vunpack.c.l.bf16 %v193
        %v234 = vunpack.c.l.bf16 %v194
        %v235 = vunpack.c.l.bf16 %v195
        %v236 = vunpack.c.l.bf16 %v196
        %v237 = vunpack.c.l.bf16 %v197
        %v238 = vunpack.c.l.bf16 %v198
        %v239 = vunpack.c.l.bf16 %v199
        %v240 = vunpack.c.l.bf16 %v200
        %v241 = vunpack.c.l.bf16 %v201
        %v242 = vunpack.c.l.bf16 %v202
        %v243 = vunpack.c.l.bf16 %v203
        %v244 = vunpack.c.l.bf16 %v204
        %v245 = vunpack.c.l.bf16 %v205
        %v246 = vunpack.c.l.bf16 %v206
        %v247 = vunpack.c.l.bf16 %v207
        %v248 = vunpack.c.l.bf16 %v208
        %v249 = vunpack.c.l.bf16 %v209
        %v250 = vmax.f32 %v210, %v212
        %v251 = vmax.f32 %v211, %v213
        %v252 = vmax.f32 %v214, %v216
        %v253 = vmax.f32 %v215, %v217
        %v254 = vmax.f32 %v218, %v220
        %v255 = vmax.f32 %v219, %v221
        %v256 = vmax.f32 %v222, %v224
        %v257 = vmax.f32 %v223, %v225
        %v258 = vmax.f32 %v226, %v228
        %v259 = vmax.f32 %v227, %v229
        %v260 = vmax.f32 %v230, %v232
        %v261 = vmax.f32 %v231, %v233
        %v262 = vmax.f32 %v234, %v236
        %v263 = vmax.f32 %v235, %v237
        %v264 = vmax.f32 %v238, %v240
        %v265 = vmax.f32 %v239, %v241
        %v266 = vmax.f32 %v242, %v244
        %v267 = vmax.f32 %v243, %v245
        %v268 = vmax.f32 %v246, %v248
        %v269 = vmax.f32 %v247, %v249
        %290 = vrot.lane.b32.xlu0 %v250, 120
        %v291 = vpop.permute.xlu0 %290
        %292 = vrot.lane.b32.xlu0 %v251, 120
        %v293 = vpop.permute.xlu0 %292
        %294 = vrot.lane.b32.xlu0 %v252, 120
        %v295 = vpop.permute.xlu0 %294
        %296 = vrot.lane.b32.xlu0 %v253, 120
        %v297 = vpop.permute.xlu0 %296
        %298 = vrot.lane.b32.xlu0 %v254, 120
        %v299 = vpop.permute.xlu0 %298
        %300 = vrot.lane.b32.xlu0 %v255, 120
        %v301 = vpop.permute.xlu0 %300
        %302 = vrot.lane.b32.xlu0 %v256, 120
        %v303 = vpop.permute.xlu0 %302
        %304 = vrot.lane.b32.xlu0 %v257, 120
        %v305 = vpop.permute.xlu0 %304
        %306 = vrot.lane.b32.xlu0 %v258, 120
        %v307 = vpop.permute.xlu0 %306
        %308 = vrot.lane.b32.xlu0 %v259, 120
        %v309 = vpop.permute.xlu0 %308
        %310 = vrot.lane.b32.xlu0 %v260, 120
        %v311 = vpop.permute.xlu0 %310
        %312 = vrot.lane.b32.xlu0 %v261, 120
        %v313 = vpop.permute.xlu0 %312
        %314 = vrot.lane.b32.xlu0 %v262, 120
        %v315 = vpop.permute.xlu0 %314
        %316 = vrot.lane.b32.xlu0 %v263, 120
        %v317 = vpop.permute.xlu0 %316
        %318 = vrot.lane.b32.xlu0 %v264, 120
        %v319 = vpop.permute.xlu0 %318
        %320 = vrot.lane.b32.xlu0 %v265, 120
        %v321 = vpop.permute.xlu0 %320
        %322 = vrot.lane.b32.xlu0 %v266, 120
        %v323 = vpop.permute.xlu0 %322
        %324 = vrot.lane.b32.xlu0 %v267, 120
        %v325 = vpop.permute.xlu0 %324
        %326 = vrot.lane.b32.xlu0 %v268, 120
        %v327 = vpop.permute.xlu0 %326
        %328 = vrot.lane.b32.xlu0 %v269, 120
        %v329 = vpop.permute.xlu0 %328
        %v350 = vmax.f32 %v250, %v291
        %v351 = vmax.f32 %v251, %v293
        %v352 = vmax.f32 %v252, %v295
        %v353 = vmax.f32 %v253, %v297
        %v354 = vmax.f32 %v254, %v299
        %v355 = vmax.f32 %v255, %v301
        %v356 = vmax.f32 %v256, %v303
        %v357 = vmax.f32 %v257, %v305
        %v358 = vmax.f32 %v258, %v307
        %v359 = vmax.f32 %v259, %v309
        %v360 = vmax.f32 %v260, %v311
        %v361 = vmax.f32 %v261, %v313
        %v362 = vmax.f32 %v262, %v315
        %v363 = vmax.f32 %v263, %v317
        %v364 = vmax.f32 %v264, %v319
        %v365 = vmax.f32 %v265, %v321
        %v366 = vmax.f32 %v266, %v323
        %v367 = vmax.f32 %v267, %v325
        %v368 = vmax.f32 %v268, %v327
        %v369 = vmax.f32 %v269, %v329
        %vm386 = vcmask 1046528
        %v387 = vrot.slane %v350, 1
        %v388 = vrot.slane %v351, 1
        %v389 = vsel %vm386, %v387, %v388
        %v390 = vrot.slane %v352, 1
        %v391 = vrot.slane %v353, 1
        %v392 = vsel %vm386, %v390, %v391
        %v393 = vrot.slane %v354, 1
        %v394 = vrot.slane %v355, 1
        %v395 = vsel %vm386, %v393, %v394
        %v396 = vrot.slane %v356, 1
        %v397 = vrot.slane %v357, 1
        %v398 = vsel %vm386, %v396, %v397
        %v399 = vrot.slane %v358, 1
        %v400 = vrot.slane %v359, 1
        %v401 = vsel %vm386, %v399, %v400
        %v402 = vrot.slane %v360, 1
        %v403 = vrot.slane %v361, 1
        %v404 = vsel %vm386, %v402, %v403
        %v405 = vrot.slane %v362, 1
        %v406 = vrot.slane %v363, 1
        %v407 = vsel %vm386, %v405, %v406
        %v408 = vrot.slane %v364, 1
        %v409 = vrot.slane %v365, 1
        %v410 = vsel %vm386, %v408, %v409
        %411 = vrot.lane.b32.xlu0 %v389, 8
        %v412 = vpop.permute.xlu0 %411
        %413 = vrot.lane.b32.xlu0 %v392, 8
        %v414 = vpop.permute.xlu0 %413
        %415 = vrot.lane.b32.xlu0 %v395, 8
        %v416 = vpop.permute.xlu0 %415
        %417 = vrot.lane.b32.xlu0 %v398, 8
        %v418 = vpop.permute.xlu0 %417
        %419 = vrot.lane.b32.xlu0 %v401, 8
        %v420 = vpop.permute.xlu0 %419
        %421 = vrot.lane.b32.xlu0 %v404, 8
        %v422 = vpop.permute.xlu0 %421
        %423 = vrot.lane.b32.xlu0 %v407, 8
        %v424 = vpop.permute.xlu0 %423
        %425 = vrot.lane.b32.xlu0 %v410, 8
        %v426 = vpop.permute.xlu0 %425
        %vm435 = vcmask 1045504
        %v436 = vrot.slane %v350, 2
        %v437 = vrot.slane %v351, 2
        %v438 = vsel %vm435, %v436, %v437
        %v439 = vrot.slane %v352, 2
        %v440 = vrot.slane %v353, 2
        %v441 = vsel %vm435, %v439, %v440
        %v442 = vrot.slane %v354, 2
        %v443 = vrot.slane %v355, 2
        %v444 = vsel %vm435, %v442, %v443
        %v445 = vrot.slane %v356, 2
        %v446 = vrot.slane %v357, 2
        %v447 = vsel %vm435, %v445, %v446
        %v448 = vrot.slane %v358, 2
        %v449 = vrot.slane %v359, 2
        %v450 = vsel %vm435, %v448, %v449
        %v451 = vrot.slane %v360, 2
        %v452 = vrot.slane %v361, 2
        %v453 = vsel %vm435, %v451, %v452
        %v454 = vrot.slane %v362, 2
        %v455 = vrot.slane %v363, 2
        %v456 = vsel %vm435, %v454, %v455
        %v457 = vrot.slane %v364, 2
        %v458 = vrot.slane %v365, 2
        %v459 = vsel %vm435, %v457, %v458
        %460 = vrot.lane.b32.xlu0 %v438, 16
        %v461 = vpop.permute.xlu0 %460
        %462 = vrot.lane.b32.xlu0 %v441, 16
        %v463 = vpop.permute.xlu0 %462
        %464 = vrot.lane.b32.xlu0 %v444, 16
        %v465 = vpop.permute.xlu0 %464
        %466 = vrot.lane.b32.xlu0 %v447, 16
        %v467 = vpop.permute.xlu0 %466
        %468 = vrot.lane.b32.xlu0 %v450, 16
        %v469 = vpop.permute.xlu0 %468
        %470 = vrot.lane.b32.xlu0 %v453, 16
        %v471 = vpop.permute.xlu0 %470
        %472 = vrot.lane.b32.xlu0 %v456, 16
        %v473 = vpop.permute.xlu0 %472
        %474 = vrot.lane.b32.xlu0 %v459, 16
        %v475 = vpop.permute.xlu0 %474
        %485 = vrot.lane.b32.xlu0 %v352, 24
        %v486 = vpop.permute.xlu0 %485
        %487 = vrot.lane.b32.xlu0 %v354, 24
        %v488 = vpop.permute.xlu0 %487
        %489 = vrot.lane.b32.xlu0 %v356, 24
        %v490 = vpop.permute.xlu0 %489
        %491 = vrot.lane.b32.xlu0 %v358, 24
        %v492 = vpop.permute.xlu0 %491
        %493 = vrot.lane.b32.xlu0 %v360, 24
        %v494 = vpop.permute.xlu0 %493
        %495 = vrot.lane.b32.xlu0 %v362, 24
        %v496 = vpop.permute.xlu0 %495
        %497 = vrot.lane.b32.xlu0 %v364, 24
        %v498 = vpop.permute.xlu0 %497
        %499 = vrot.lane.b32.xlu0 %v366, 24
        %v500 = vpop.permute.xlu0 %499
        %v510 = vrot.slane %v366, 1
        %v511 = vrot.slane %v367, 1
        %v512 = vsel %vm386, %v510, %v511
        %513 = vrot.lane.b32.xlu0 %v392, 32
        %v514 = vpop.permute.xlu0 %513
        %515 = vrot.lane.b32.xlu0 %v395, 32
        %v516 = vpop.permute.xlu0 %515
        %517 = vrot.lane.b32.xlu0 %v398, 32
        %v518 = vpop.permute.xlu0 %517
        %519 = vrot.lane.b32.xlu0 %v401, 32
        %v520 = vpop.permute.xlu0 %519
        %521 = vrot.lane.b32.xlu0 %v404, 32
        %v522 = vpop.permute.xlu0 %521
        %523 = vrot.lane.b32.xlu0 %v407, 32
        %v524 = vpop.permute.xlu0 %523
        %525 = vrot.lane.b32.xlu0 %v410, 32
        %v526 = vpop.permute.xlu0 %525
        %527 = vrot.lane.b32.xlu0 %v512, 32
        %v528 = vpop.permute.xlu0 %527
        %v537 = vrot.slane %v366, 2
        %v538 = vrot.slane %v367, 2
        %v539 = vsel %vm435, %v537, %v538
        %540 = vrot.lane.b32.xlu0 %v441, 40
        %v541 = vpop.permute.xlu0 %540
        %542 = vrot.lane.b32.xlu0 %v444, 40
        %v543 = vpop.permute.xlu0 %542
        %544 = vrot.lane.b32.xlu0 %v447, 40
        %v545 = vpop.permute.xlu0 %544
        %546 = vrot.lane.b32.xlu0 %v450, 40
        %v547 = vpop.permute.xlu0 %546
        %548 = vrot.lane.b32.xlu0 %v453, 40
        %v549 = vpop.permute.xlu0 %548
        %550 = vrot.lane.b32.xlu0 %v456, 40
        %v551 = vpop.permute.xlu0 %550
        %552 = vrot.lane.b32.xlu0 %v459, 40
        %v553 = vpop.permute.xlu0 %552
        %554 = vrot.lane.b32.xlu0 %v539, 40
        %v555 = vpop.permute.xlu0 %554
        %565 = vrot.lane.b32.xlu0 %v354, 48
        %v566 = vpop.permute.xlu0 %565
        %567 = vrot.lane.b32.xlu0 %v356, 48
        %v568 = vpop.permute.xlu0 %567
        %569 = vrot.lane.b32.xlu0 %v358, 48
        %v570 = vpop.permute.xlu0 %569
        %571 = vrot.lane.b32.xlu0 %v360, 48
        %v572 = vpop.permute.xlu0 %571
        %573 = vrot.lane.b32.xlu0 %v362, 48
        %v574 = vpop.permute.xlu0 %573
        %575 = vrot.lane.b32.xlu0 %v364, 48
        %v576 = vpop.permute.xlu0 %575
        %577 = vrot.lane.b32.xlu0 %v366, 48
        %v578 = vpop.permute.xlu0 %577
        %579 = vrot.lane.b32.xlu0 %v368, 48
        %v580 = vpop.permute.xlu0 %579
        %v590 = vrot.slane %v368, 1
        %v591 = vrot.slane %v369, 1
        %v592 = vsel %vm386, %v590, %v591
        %593 = vrot.lane.b32.xlu0 %v395, 56
        %v594 = vpop.permute.xlu0 %593
        %595 = vrot.lane.b32.xlu0 %v398, 56
        %v596 = vpop.permute.xlu0 %595
        %597 = vrot.lane.b32.xlu0 %v401, 56
        %v598 = vpop.permute.xlu0 %597
        %599 = vrot.lane.b32.xlu0 %v404, 56
        %v600 = vpop.permute.xlu0 %599
        %601 = vrot.lane.b32.xlu0 %v407, 56
        %v602 = vpop.permute.xlu0 %601
        %603 = vrot.lane.b32.xlu0 %v410, 56
        %v604 = vpop.permute.xlu0 %603
        %605 = vrot.lane.b32.xlu0 %v512, 56
        %v606 = vpop.permute.xlu0 %605
        %607 = vrot.lane.b32.xlu0 %v592, 56
        %v608 = vpop.permute.xlu0 %607
        %v617 = vrot.slane %v368, 2
        %v618 = vrot.slane %v369, 2
        %v619 = vsel %vm435, %v617, %v618
        %620 = vrot.lane.b32.xlu0 %v444, 64
        %v621 = vpop.permute.xlu0 %620
        %622 = vrot.lane.b32.xlu0 %v447, 64
        %v623 = vpop.permute.xlu0 %622
        %624 = vrot.lane.b32.xlu0 %v450, 64
        %v625 = vpop.permute.xlu0 %624
        %626 = vrot.lane.b32.xlu0 %v453, 64
        %v627 = vpop.permute.xlu0 %626
        %628 = vrot.lane.b32.xlu0 %v456, 64
        %v629 = vpop.permute.xlu0 %628
        %630 = vrot.lane.b32.xlu0 %v459, 64
        %v631 = vpop.permute.xlu0 %630
        %632 = vrot.lane.b32.xlu0 %v539, 64
        %v633 = vpop.permute.xlu0 %632
        %634 = vrot.lane.b32.xlu0 %v619, 64
        %v635 = vpop.permute.xlu0 %634
        %vm644 = vcmask 64512
        %v645 = vsel %vm644, %v350, %v412
        %v646 = vsel %vm644, %v352, %v414
        %v647 = vsel %vm644, %v354, %v416
        %v648 = vsel %vm644, %v356, %v418
        %v649 = vsel %vm644, %v358, %v420
        %v650 = vsel %vm644, %v360, %v422
        %v651 = vsel %vm644, %v362, %v424
        %v652 = vsel %vm644, %v364, %v426
        %vm653 = vcmask 130048
        %v654 = vsel %vm653, %v645, %v461
        %v655 = vsel %vm653, %v646, %v463
        %v656 = vsel %vm653, %v647, %v465
        %v657 = vsel %vm653, %v648, %v467
        %v658 = vsel %vm653, %v649, %v469
        %v659 = vsel %vm653, %v650, %v471
        %v660 = vsel %vm653, %v651, %v473
        %v661 = vsel %vm653, %v652, %v475
        %vm662 = vcmask 195584
        %v663 = vsel %vm662, %v654, %v486
        %v664 = vsel %vm662, %v655, %v488
        %v665 = vsel %vm662, %v656, %v490
        %v666 = vsel %vm662, %v657, %v492
        %v667 = vsel %vm662, %v658, %v494
        %v668 = vsel %vm662, %v659, %v496
        %v669 = vsel %vm662, %v660, %v498
        %v670 = vsel %vm662, %v661, %v500
        %vm671 = vcmask 261120
        %v672 = vsel %vm671, %v663, %v514
        %v673 = vsel %vm671, %v664, %v516
        %v674 = vsel %vm671, %v665, %v518
        %v675 = vsel %vm671, %v666, %v520
        %v676 = vsel %vm671, %v667, %v522
        %v677 = vsel %vm671, %v668, %v524
        %v678 = vsel %vm671, %v669, %v526
        %v679 = vsel %vm671, %v670, %v528
        %vm680 = vcmask 326656
        %v681 = vsel %vm680, %v672, %v541
        %v682 = vsel %vm680, %v673, %v543
        %v683 = vsel %vm680, %v674, %v545
        %v684 = vsel %vm680, %v675, %v547
        %v685 = vsel %vm680, %v676, %v549
        %v686 = vsel %vm680, %v677, %v551
        %v687 = vsel %vm680, %v678, %v553
        %v688 = vsel %vm680, %v679, %v555
        %vm689 = vcmask 392192
        %v690 = vsel %vm689, %v681, %v566
        %v691 = vsel %vm689, %v682, %v568
        %v692 = vsel %vm689, %v683, %v570
        %v693 = vsel %vm689, %v684, %v572
        %v694 = vsel %vm689, %v685, %v574
        %v695 = vsel %vm689, %v686, %v576
        %v696 = vsel %vm689, %v687, %v578
        %v697 = vsel %vm689, %v688, %v580
        %vm698 = vcmask 457728
        %v699 = vsel %vm698, %v690, %v594
        %v700 = vsel %vm698, %v691, %v596
        %v701 = vsel %vm698, %v692, %v598
        %v702 = vsel %vm698, %v693, %v600
        %v703 = vsel %vm698, %v694, %v602
        %v704 = vsel %vm698, %v695, %v604
        %v705 = vsel %vm698, %v696, %v606
        %v706 = vsel %vm698, %v697, %v608
        %vm707 = vcmask 523264
        %v708 = vsel %vm707, %v699, %v621
        %v709 = vsel %vm707, %v700, %v623
        %v710 = vsel %vm707, %v701, %v625
        %v711 = vsel %vm707, %v702, %v627
        %v712 = vsel %vm707, %v703, %v629
        %v713 = vsel %vm707, %v704, %v631
        %v714 = vsel %vm707, %v705, %v633
        %v715 = vsel %vm707, %v706, %v635
        %v716 = vpack.c.bf16 %v709, %v708
        %v717 = vpack.c.bf16 %v711, %v710
        %v718 = vpack.c.bf16 %v713, %v712
        %v719 = vpack.c.bf16 %v715, %v714
        %v720 = vld [vmem:[%s1] sm:$0xf]
        %v721 = vld [vmem:[%s1 + $0x4] sm:$0xf]
        %v722 = vld [vmem:[%s1 + $0x8] sm:$0xf]
        %v723 = vld [vmem:[%s1 + $0xc] sm:$0xf]
        %v724 = vld [vmem:[%s1 + $0x10] sm:$0xf]
        %v725 = vld [vmem:[%s1 + $0x14] sm:$0xf]
        %v726 = vld [vmem:[%s1 + $0x18] sm:$0xf]
        %v727 = vld [vmem:[%s1 + $0x1c] sm:$0xf]
        %v728 = vld [vmem:[%s1 + $0x20] sm:$0xf]
        %v729 = vld [vmem:[%s2] sm:$0x1]
        %v731 = vperm.slane %v729, 0
        %v742 = vunpack.c.l.b16 %v720
        %v743 = vunpack.c.l.b16 %v721
        %v744 = vunpack.c.l.b16 %v722
        %v745 = vunpack.c.l.b16 %v723
        %v746 = vunpack.c.l.b16 %v724
        %v747 = vunpack.c.l.b16 %v725
        %v748 = vunpack.c.l.b16 %v726
        %v749 = vunpack.c.l.b16 %v727
        %v750 = vunpack.c.l.b16 %v728
        %v751 = vpack.c.b16 %v743, %v742
        %v752 = vpack.c.b16 %v745, %v744
        %v753 = vpack.c.b16 %v747, %v746
        %v754 = vpack.c.b16 %v749, %v748
        %v755 = vpack.c.b16 %v750, %v750
        %vm760 = vcmask 588800
        %v762 = vsel %vm760, %v716, 0
        %v765 = vsel %vm760, %v717, 0
        %v768 = vsel %vm760, %v718, 0
        %v771 = vsel %vm760, %v719, 0
        %vm773 = vcmask 1043456
        %v775 = vsel %vm773, %v755, 0
        %777 = vmatpush.bf16.msra.mxu0 0
        %778 = vmatpush.bf16.msra.mxu0 0
        %779 = vmatpush.bf16.msra.mxu0 0
        %780 = vmatpush.bf16.msra.mxu0 %v775
        %781 = vmatpush.bf16.msra.mxu0 %v754
        %782 = vmatpush.bf16.msra.mxu0 %v753
        %783 = vmatpush.bf16.msra.mxu0 %v752
        %784 = vmatpush.bf16.msra.mxu0 %v751
        %785 = vmatmul.bf16.gmra.mxu0 %v762
        %v786 = vpop.f32.mrf.mxu0
        %v787 = vadd.f32 %v731, %v786
        %v788 = vpop.f32.mrf.mxu0
        %v789 = vadd.f32 %v731, %v788
        %790 = vmatmul.bf16.gmra.mxu0 %v765
        %v791 = vpop.f32.mrf.mxu0
        %v792 = vadd.f32 %v731, %v791
        %v793 = vpop.f32.mrf.mxu0
        %v794 = vadd.f32 %v731, %v793
        %795 = vmatmul.bf16.gmra.mxu0 %v768
        %v796 = vpop.f32.mrf.mxu0
        %v797 = vadd.f32 %v731, %v796
        %v798 = vpop.f32.mrf.mxu0
        %v799 = vadd.f32 %v731, %v798
        %800 = vmatmul.bf16.gmra.mxu0 %v771
        %v801 = vpop.f32.mrf.mxu0
        %v802 = vadd.f32 %v731, %v801
        %v803 = vpop.f32.mrf.mxu0
        %v804 = vadd.f32 %v731, %v803
        %805 = vdwg.mxu0
        %v806 = vmax.f32 %v787, 0.0
        %v807 = vmax.f32 %v789, 0.0
        %v808 = vmax.f32 %v792, 0.0
        %v809 = vmax.f32 %v794, 0.0
        %v810 = vmax.f32 %v797, 0.0
        %v811 = vmax.f32 %v799, 0.0
        %v812 = vmax.f32 %v802, 0.0
        %v813 = vmax.f32 %v804, 0.0
        %814 = vst [vmem:[%s163] sm:$0xff] %v806
        %815 = vst [vmem:[%s163 + $0x8] sm:$0xff] %v807
        %816 = vst [vmem:[%s163 + $0x10] sm:$0xff] %v808
        %817 = vst [vmem:[%s163 + $0x18] sm:$0xff] %v809
        %818 = vst [vmem:[%s163 + $0x20] sm:$0xff] %v810
        %819 = vst [vmem:[%s163 + $0x28] sm:$0xff] %v811
        %820 = vst [vmem:[%s163 + $0x30] sm:$0xff] %v812
        %821 = vst [vmem:[%s163 + $0x38] sm:$0xff] %v813
        %s822 = sand.u32 %s93, 1
        %s823 = scalar_lea.sflag [#allocation3], %s822
        %s824 = sand.u32 %s93, 1
        %s825 = smul.addr %s824, 64
        %s826 = scalar_lea.vmem [#allocation2], %s825
        // Predicated region
        $region33: #{tpu_custom_call.1} parent=31 // pred_check
          %p827 = pneg %p103
        $region34: #{tpu_custom_call.1} parent=31 // pred_check_branch
          %829 = sbr.rel (%p827) target = $region36
        $region35: #{tpu_custom_call.1} parent=31 // pred_region
          %831 = vsyncadd %s823, 0
          %s832 = smul.addr %s17, 8
          %s833 = smul.addr %s832, 8
          %s834 = scalar_lea.hbm %s3, %s833
          %s835 = sshll.u32 %s826, 4
          %s836 = int_to_ptr.vmem [resolvable:$true] %s835
          %s837 = sshll.u32 %s834, 4
          %s838 = int_to_ptr.hbm [resolvable:$true] %s837
          %843 = dma.vmem_to_hbm [thread:$0]  %s836, 1024, %s838, %s823, 128, 128, 8
        $region36: #{tpu_custom_call.1} parent=31 // pred_fallthru
          _
      $region32: #{tpu_custom_call.1} parent=5 // pred_fallthru
        _
      %p844 = scmp.le.s32.totalorder 2, %s12
      // Predicated region
      $region37: #{tpu_custom_call.1} parent=5 // pred_check
        %p845 = pneg %p844
      $region38: #{tpu_custom_call.1} parent=5 // pred_check_branch
        %847 = sbr.rel (%p845) target = $region40
      $region39: #{tpu_custom_call.1} parent=5 // pred_region
        %s848 = ssub.s32 %s12, 2
        // Predicated region
        $region41: #{tpu_custom_call.1} parent=39 // pred_check
          %p849 = pneg %p109
        $region42: #{tpu_custom_call.1} parent=39 // pred_check_branch
          %851 = sbr.rel (%p849) target = $region44
        $region43: #{tpu_custom_call.1} parent=39 // pred_region
          %s852 = sand.u32 %s94, 1
          %s853 = scalar_lea.sflag [#allocation3], %s852
          %s854 = sand.u32 %s94, 1
          %s855 = smul.addr %s854, 64
          %s856 = scalar_lea.vmem [#allocation2], %s855
          %858 = dma.done %s853, 1024
        $region44: #{tpu_custom_call.1} parent=39 // pred_fallthru
          _
      $region40: #{tpu_custom_call.1} parent=5 // pred_fallthru
        _
    $region6: #{tpu_custom_call.1} parent=1 // loop_footer
      %s16 = sadd.s32 1, %s12
    $region7: #{tpu_custom_call.1} parent=1 // loop_footer_branch
      %11 = sbr.rel target = $region3
    $region8: #{tpu_custom_call.1} parent=1 // loop_exit
      _
    %859 = vsyncpa [#allocation3], 1
    %s860 = scalar_lea.sflag [#allocation3], 1
    %861 = vsyncpa %s860, 1

</llo_original>
